<compile_context>
chip_gen: v7x
topology: tpu7x:2x2x1
jax: 0.10.0
libtpu: 0.0.40
codegen_flags: <defaults>
</compile_context>

<pallas_src>
import jax
import jax.numpy as jnp
from jax import lax
from jax.experimental import pallas as pl
from jax.experimental.pallas import tpu as pltpu


def _round_up(x, m):
    return ((x + m - 1) // m) * m


def _fused_matmul_bn_relu_kernel(x_ref, w_ref, sb_ref, o_ref):
    # x_ref : (TM, KP)  bf16  im2col patch rows for this M-tile (zero-padded K)
    # w_ref : (KP, NP)  bf16  conv weight, rows = (kh, kw, cin) flattened (zero-padded)
    # sb_ref: (2, NP)   f32   row 0 = folded BN scale, row 1 = folded BN bias
    # o_ref : (TM, NP)  f32   lane-dense output tile
    acc = jnp.dot(x_ref[...], w_ref[...], preferred_element_type=jnp.float32)
    y = acc * sb_ref[0, :] + sb_ref[1, :]
    o_ref[...] = jnp.maximum(y, 0.0)


def basic_conv2d_pallas(x_nchw, weight_oihw, gamma, beta, running_mean,
                        running_var, *, stride=1, padding=0, dilation=1,
                        eps=1e-5):
    """Fused Conv2d(bias=False) + BatchNorm2d(eval) + ReLU.

    x_nchw      : (N, Cin, H, W)      float32
    weight_oihw : (Cout, Cin, KH, KW) float32  (PyTorch conv weight layout)
    returns     : (N, Cout, Hout, Wout) float32
    """
    N, CIN, H, W = x_nchw.shape
    COUT, _, KH, KW = weight_oihw.shape

    HOUT = (H + 2 * padding - dilation * (KH - 1) - 1) // stride + 1
    WOUT = (W + 2 * padding - dilation * (KW - 1) - 1) // stride + 1

    # ---- layout / parameter prep (plain JAX, off the kernel critical path) ----
    x_nhwc = jnp.transpose(x_nchw, (0, 2, 3, 1)).astype(jnp.float32)
    x_pad = jnp.pad(x_nhwc,
                    ((0, 0), (padding, padding), (padding, padding), (0, 0)))

    # im2col: (N, HOUT, WOUT, KH*KW*CIN) with (kh, kw, cin) channel ordering.
    taps = []
    for kh in range(KH):
        for kw in range(KW):
            taps.append(lax.slice(
                x_pad,
                (0, kh * dilation, kw * dilation, 0),
                (N, kh * dilation + (HOUT - 1) * stride + 1,
                 kw * dilation + (WOUT - 1) * stride + 1, CIN),
                (1, stride, stride, 1)))
    K = KH * KW * CIN
    M = N * HOUT * WOUT
    patches = jnp.concatenate(taps, axis=-1).reshape(M, K)

    # Pad to lane/sublane friendly shapes.
    KP = _round_up(K, 128)           # contraction dim (lane dim of patches)
    NP = _round_up(COUT, 128)        # output channels -> lane-dense output
    TM = min(256, _round_up(M, 8))   # M tile
    MP = _round_up(M, TM)

    patches = jnp.pad(patches, ((0, MP - M), (0, KP - K))).astype(jnp.bfloat16)

    # (Cout, Cin, KH, KW) -> (KH, KW, Cin, Cout) -> (K, Cout) -> zero-pad (KP, NP).
    w2d = jnp.transpose(weight_oihw, (2, 3, 1, 0)).reshape(K, COUT)
    w2d = jnp.pad(w2d, ((0, KP - K), (0, NP - COUT))).astype(jnp.bfloat16)

    # Folded BN params; padded channels get scale=bias=0 so they stay 0 through ReLU.
    scale = gamma / jnp.sqrt(running_var + eps)
    bias = beta - running_mean * scale
    sb = jnp.stack([scale, bias]).astype(jnp.float32)          # (2, COUT)
    sb = jnp.pad(sb, ((0, 0), (0, NP - COUT)))                 # (2, NP)

    grid = (MP // TM,)
    cost = pl.CostEstimate(
        flops=2 * M * K * COUT,
        transcendentals=0,
        bytes_accessed=int(patches.size * 2 + w2d.size * 2 + MP * NP * 4),
    )

    out2d = pl.pallas_call(
        _fused_matmul_bn_relu_kernel,
        out_shape=jax.ShapeDtypeStruct((MP, NP), jnp.float32),
        grid_spec=pltpu.PrefetchScalarGridSpec(
            num_scalar_prefetch=0,
            grid=grid,
            in_specs=[
                pl.BlockSpec((TM, KP), lambda i: (i, 0)),
                pl.BlockSpec((KP, NP), lambda i: (0, 0)),
                pl.BlockSpec((2, NP), lambda i: (0, 0)),
            ],
            out_specs=pl.BlockSpec((TM, NP), lambda i: (i, 0)),
        ),
        compiler_params=pltpu.CompilerParams(
            dimension_semantics=("parallel",)),
        cost_estimate=cost,
    )(patches, w2d, sb)

    # Strip padding, back to PyTorch NCHW.
    out = out2d[:M, :COUT].reshape(N, HOUT, WOUT, COUT)
    return jnp.transpose(out, (0, 3, 1, 2))


def _reference(x_nchw, weight_oihw, gamma, beta, mean, var, *, stride, padding,
               dilation, eps=1e-5):
    y = lax.conv_general_dilated(
        x_nchw, weight_oihw,
        window_strides=(stride, stride),
        padding=[(padding, padding), (padding, padding)],
        rhs_dilation=(dilation, dilation),
        dimension_numbers=("NCHW", "OIHW", "NCHW"),
        precision=lax.Precision.HIGHEST)
    scale = gamma / jnp.sqrt(var + eps)
    bias = beta - mean * scale
    y = y * scale[None, :, None, None] + bias[None, :, None, None]
    return jnp.maximum(y, 0.0)


if __name__ == "__main__":
    # Module config: BasicConv2d(in_planes=4, out_planes=8, kernel_size=3,
    #                            stride=1, padding=1, dilation=1)
    N, CIN, H, W = 2, 4, 16, 16
    COUT, K = 8, 3
    stride, padding, dilation = 1, 1, 1

    key = jax.random.PRNGKey(0)
    kx, kw, kg, kb, km, kv = jax.random.split(key, 6)

    x = jax.random.normal(kx, (N, CIN, H, W), dtype=jnp.float32)
    weight = 0.1 * jax.random.normal(kw, (COUT, CIN, K, K), dtype=jnp.float32)
    gamma = 1.0 + 0.1 * jax.random.normal(kg, (COUT,), dtype=jnp.float32)
    beta = 0.1 * jax.random.normal(kb, (COUT,), dtype=jnp.float32)
    running_mean = 0.1 * jax.random.normal(km, (COUT,), dtype=jnp.float32)
    running_var = jnp.abs(jax.random.normal(kv, (COUT,), dtype=jnp.float32)) + 0.5

    out = basic_conv2d_pallas(x, weight, gamma, beta, running_mean, running_var,
                              stride=stride, padding=padding, dilation=dilation)
    out = jax.block_until_ready(out)

    # Reference computed with bf16-rounded inputs (kernel uses bf16 operands with
    # f32 accumulation), BN/ReLU in f32 -> tight tolerance is valid.
    x_bf = x.astype(jnp.bfloat16).astype(jnp.float32)
    w_bf = weight.astype(jnp.bfloat16).astype(jnp.float32)
    ref = _reference(x_bf, w_bf, gamma, beta, running_mean, running_var,
                     stride=stride, padding=padding, dilation=dilation)

    assert out.shape == (N, COUT, H, W), out.shape
    assert jnp.allclose(out, ref, atol=2e-3, rtol=2e-3), (
        float(jnp.max(jnp.abs(out - ref))))

    print("KERNEL_OK")
</pallas_src>

<mosaic_0001>
module attributes {stable_mosaic.version = 11 : i64} {
  func.func @_fused_matmul_bn_relu_kernel(%arg0: i32, %arg1: memref<256x128xbf16, #tpu.memory_space<vmem>>, %arg2: memref<128x128xbf16, #tpu.memory_space<vmem>>, %arg3: memref<2x128xf32, #tpu.memory_space<vmem>>, %arg4: memref<256x128xf32, #tpu.memory_space<vmem>>) attributes {dimension_semantics = [#tpu.dimension_semantics<parallel>], iteration_bounds = array<i64: 2>, scalar_prefetch = 0 : i64, scratch_operands = 0 : i64, tpu.core_type = #tpu.core_type<tc>, window_params = [{transform_indices = @transform_0, window_bounds = array<i64: 256, 128>}, {pipeline_mode = #tpu.pipeline_mode<synchronous>, transform_indices = @transform_1, window_bounds = array<i64: 128, 128>}, {pipeline_mode = #tpu.pipeline_mode<synchronous>, transform_indices = @transform_2, window_bounds = array<i64: 2, 128>}, {transform_indices = @transform_3, window_bounds = array<i64: 256, 128>}]} {
    %c0 = arith.constant 0 : index
    %c0_0 = arith.constant 0 : index
    %0 = vector.load %arg1[%c0, %c0_0] : memref<256x128xbf16, #tpu.memory_space<vmem>>, vector<256x128xbf16>
    %c0_1 = arith.constant 0 : index
    %c0_2 = arith.constant 0 : index
    %1 = vector.load %arg2[%c0_1, %c0_2] : memref<128x128xbf16, #tpu.memory_space<vmem>>, vector<128x128xbf16>
    %cst = arith.constant dense<0.000000e+00> : vector<256x128xf32>
    %2 = tpu.matmul %0, %1, %cst {dimension_numbers = #tpu.dot_dimension_numbers<[1], [0], [0], [1], [0, 0, 1, 1], [], []>} : vector<256x128xbf16>, vector<128x128xbf16>, vector<256x128xf32> -> vector<256x128xf32>
    %c0_3 = arith.constant 0 : index
    %c0_4 = arith.constant 0 : index
    %3 = vector.load %arg3[%c0_3, %c0_4] : memref<2x128xf32, #tpu.memory_space<vmem>>, vector<1x128xf32>
    %4 = vector.shape_cast %3 : vector<1x128xf32> to vector<128xf32>
    %5 = vector.shape_cast %4 : vector<128xf32> to vector<1x128xf32>
    %6 = vector.broadcast %5 : vector<1x128xf32> to vector<256x128xf32>
    %7 = arith.mulf %2, %6 : vector<256x128xf32>
    %c1 = arith.constant 1 : index
    %c0_5 = arith.constant 0 : index
    %8 = vector.load %arg3[%c1, %c0_5] : memref<2x128xf32, #tpu.memory_space<vmem>>, vector<1x128xf32>
    %9 = vector.shape_cast %8 : vector<1x128xf32> to vector<128xf32>
    %10 = vector.shape_cast %9 : vector<128xf32> to vector<1x128xf32>
    %11 = vector.broadcast %10 : vector<1x128xf32> to vector<256x128xf32>
    %12 = arith.addf %7, %11 : vector<256x128xf32>
    %cst_6 = arith.constant 0.000000e+00 : f32
    %13 = vector.broadcast %cst_6 : f32 to vector<256x128xf32>
    %14 = arith.maximumf %12, %13 : vector<256x128xf32>
    %c0_7 = arith.constant 0 : index
    %c0_8 = arith.constant 0 : index
    %15 = vector.load %arg4[%c0_7, %c0_8] : memref<256x128xf32, #tpu.memory_space<vmem>>, vector<256x128xf32>
    tpu.vector_store %arg4[%c0_7, %c0_8], %14 {strides = array<i32>} : memref<256x128xf32, #tpu.memory_space<vmem>>, vector<256x128xf32>,
    return
  }
  func.func @transform_0(%arg0: i32) -> (i32, i32) {
    %c0_i32 = arith.constant 0 : i32
    %c0_i32_0 = arith.constant 0 : i32
    return %arg0, %c0_i32 : i32, i32
  }
  func.func @transform_1(%arg0: i32) -> (i32, i32) {
    %c0_i32 = arith.constant 0 : i32
    %c0_i32_0 = arith.constant 0 : i32
    %c0_i32_1 = arith.constant 0 : i32
    return %c0_i32, %c0_i32_0 : i32, i32
  }
  func.func @transform_2(%arg0: i32) -> (i32, i32) {
    %c0_i32 = arith.constant 0 : i32
    %c0_i32_0 = arith.constant 0 : i32
    %c0_i32_1 = arith.constant 0 : i32
    return %c0_i32, %c0_i32_0 : i32, i32
  }
  func.func @transform_3(%arg0: i32) -> (i32, i32) {
    %c0_i32 = arith.constant 0 : i32
    %c0_i32_0 = arith.constant 0 : i32
    return %arg0, %c0_i32 : i32, i32
  }
}

</mosaic_0001>

<llo_original>
// kernel: tpu_custom_call.1
$region0: #{tpu_custom_call.1}
  #allocation0 [shape = 'u32[]', space=smem, size = 0x4, offset = 0x4, fixed_abs, tag = 'smem constant byte address 0x4 - core index']
  #allocation1 [shape = 'u32[144,128]{1,0:T(1,128)}', space=vmem, size = 0x12000, scoped, tag = 'internal scratch']
  %s0 = inlined_call_operand.hbm [shape: bf16[512,128], index: 0, kind: input, shape index: {}]
  %s1 = inlined_call_operand.hbm [shape: bf16[128,128], index: 1, kind: input, shape index: {}]
  %s2 = inlined_call_operand.vmem [shape: f32[2,128], index: 2, kind: input, shape index: {}]
  %s3 = inlined_call_operand.hbm [shape: f32[512,128], index: 3, kind: output, shape index: {}]
  %s4 = sld [smem:[#allocation0]]
  $region53: #{tpu_custom_call.1} parent=0
    _
  %s6 = ssub.s32 1, %s4
  %s7 = scalar_select 0, %s6, %s4
  $region1: #{tpu_custom_call.1} parent=0
    #allocation2 [shape = 'u8[131072]{0}', space=vmem, size = 0x20000, scoped, tag = 'input window, operand 0']
    #allocation3 [shape = 's32[2]{0}', space=sflag, size = 0x8, scoped, tag = 'scoped memory for tpu_custom_call.1']
    #allocation4 [shape = 's32[2]{0}', space=sflag, size = 0x8, scoped, tag = 'scoped memory for tpu_custom_call.1']
    #allocation5 [shape = 'u8[32768]{0}', space=vmem, size = 0x8000, scoped, tag = 'input window, operand 1, single buffered']
    #allocation6 [shape = 's32[1]{0}', space=sflag, size = 0x4, scoped, tag = 'scoped memory for tpu_custom_call.1']
    #allocation7 [shape = 'u8[262144]{0}', space=vmem, size = 0x40000, scoped, tag = 'output window, operand 0']
    %8 = vsyncpa [#allocation3], 0
    %s9 = scalar_lea.sflag [#allocation3], 1
    %10 = vsyncpa %s9, 0
    %11 = vsyncpa [#allocation6], 0
    %12 = vsyncpa [#allocation4], 0
    %s13 = scalar_lea.sflag [#allocation4], 1
    %14 = vsyncpa %s13, 0
    loop: start=0, step=1, limit=4
    $region2: #{tpu_custom_call.1} parent=1 // loop_pre_header
      _
    $region3: #{tpu_custom_call.1} parent=1 // loop_header
      %s16 = sphi 0, %s20
      %p17 = scmp.ge.s32.totalorder %s16, 4
      %s26 = sphi 0, %s28
      %s29 = sphi 0, %s26
      %s30 = sphi 0, %s29
      %s46 = sphi 0, %s30
      %s50 = sphi 0, %s50
      %s52 = sphi 0, %s50
      %s53 = sphi 0, %s52
      %s67 = sphi 0, %s53
      %s71 = sphi 0, %s71
      %s73 = sphi 0, %s71
      %s74 = sphi 0, %s73
      %s88 = sphi 0, %s74
      %s94 = sphi 0, %s96
      %s97 = sphi 0, %s94
      %s98 = sphi 0, %s97
      %s114 = sphi 0, %s98
    $region4: #{tpu_custom_call.1} parent=1 // loop_header_branch
      %19 = sbr.rel (%p17) target = $region8
    $region5: #{tpu_custom_call.1} parent=1 // loop_body
      %s21 = ssub.s32 %s16, 1
      %s22 = ssub.s32 %s16, 2
      %s23 = sadd.s32 %s16, 1
      %s24 = ssub.s32 %s16, %s23
      %p25 = scmp.eq.s32.totalorder %s24, 0
      %s27 = sadd.s32 %s26, 1
      %s28 = scalar_select %p25, %s26, %s27
      %p31 = pneg %p25
      %p32 = scmp.eq.s32.totalorder %s16, 1
      %p33 = por %p31, %p32
      %p34 = scmp.ne.s32.totalorder %s26, %s29
      %p35 = scmp.eq.s32.totalorder %s16, 0
      %p36 = por %p34, %p35
      %p37 = scmp.ne.s32.totalorder %s26, %s29
      %p38 = scmp.eq.s32.totalorder %s21, 1
      %p39 = por %p37, %p38
      %p40 = scmp.ne.s32.totalorder %s29, %s30
      %p41 = scmp.eq.s32.totalorder %s21, 0
      %p42 = por %p40, %p41
      %p43 = scmp.ne.s32.totalorder %s29, %s30
      %p44 = scmp.eq.s32.totalorder %s22, 1
      %p45 = por %p43, %p44
      %p47 = scmp.ne.s32.totalorder %s30, %s46
      %p48 = scmp.eq.s32.totalorder %s22, 0
      %p49 = por %p47, %p48
      %s51 = sadd.s32 %s50, 1
      %p54 = scmp.eq.s32.totalorder %s16, 1
      %p55 = scmp.ne.s32.totalorder %s50, %s52
      %p56 = scmp.eq.s32.totalorder %s16, 0
      %p57 = por %p55, %p56
      %p58 = scmp.ne.s32.totalorder %s50, %s52
      %p59 = scmp.eq.s32.totalorder %s21, 1
      %p60 = por %p58, %p59
      %p61 = scmp.ne.s32.totalorder %s52, %s53
      %p62 = scmp.eq.s32.totalorder %s21, 0
      %p63 = por %p61, %p62
      %p64 = scmp.ne.s32.totalorder %s52, %s53
      %p65 = scmp.eq.s32.totalorder %s22, 1
      %p66 = por %p64, %p65
      %p68 = scmp.ne.s32.totalorder %s53, %s67
      %p69 = scmp.eq.s32.totalorder %s22, 0
      %p70 = por %p68, %p69
      %s72 = sadd.s32 %s71, 1
      %p75 = scmp.eq.s32.totalorder %s16, 1
      %p76 = scmp.ne.s32.totalorder %s71, %s73
      %p77 = scmp.eq.s32.totalorder %s16, 0
      %p78 = por %p76, %p77
      %p79 = scmp.ne.s32.totalorder %s71, %s73
      %p80 = scmp.eq.s32.totalorder %s21, 1
      %p81 = por %p79, %p80
      %p82 = scmp.ne.s32.totalorder %s73, %s74
      %p83 = scmp.eq.s32.totalorder %s21, 0
      %p84 = por %p82, %p83
      %p85 = scmp.ne.s32.totalorder %s73, %s74
      %p86 = scmp.eq.s32.totalorder %s22, 1
      %p87 = por %p85, %p86
      %p89 = scmp.ne.s32.totalorder %s74, %s88
      %p90 = scmp.eq.s32.totalorder %s22, 0
      %p91 = por %p89, %p90
      %s92 = ssub.s32 %s16, %s23
      %p93 = scmp.eq.s32.totalorder %s92, 0
      %s95 = sadd.s32 %s94, 1
      %s96 = scalar_select %p93, %s94, %s95
      %p99 = pneg %p93
      %p100 = scmp.eq.s32.totalorder %s16, 1
      %p101 = por %p99, %p100
      %p102 = scmp.ne.s32.totalorder %s94, %s97
      %p103 = scmp.eq.s32.totalorder %s16, 0
      %p104 = por %p102, %p103
      %p105 = scmp.ne.s32.totalorder %s94, %s97
      %p106 = scmp.eq.s32.totalorder %s21, 1
      %p107 = por %p105, %p106
      %p108 = scmp.ne.s32.totalorder %s97, %s98
      %p109 = scmp.eq.s32.totalorder %s21, 0
      %p110 = por %p108, %p109
      %p111 = scmp.ne.s32.totalorder %s97, %s98
      %p112 = scmp.eq.s32.totalorder %s22, 1
      %p113 = por %p111, %p112
      %p115 = scmp.ne.s32.totalorder %s98, %s114
      %p116 = scmp.eq.s32.totalorder %s22, 0
      %p117 = por %p115, %p116
      %p118 = scmp.le.s32.totalorder 1, %s16
      %p119 = scmp.lt.s32.totalorder %s16, 3
      %p120 = pnand %p118, %p119
      %p121 = pneg %p120
      // Predicated region
      $region9: #{tpu_custom_call.1} parent=5 // pred_check
        _
      $region10: #{tpu_custom_call.1} parent=5 // pred_check_branch
        %123 = sbr.rel (%p120) target = $region12
      $region11: #{tpu_custom_call.1} parent=5 // pred_region
        %s124 = ssub.s32 %s16, 1
        // Predicated region
        $region13: #{tpu_custom_call.1} parent=11 // pred_check
          %p125 = pneg %p63
        $region14: #{tpu_custom_call.1} parent=11 // pred_check_branch
          %127 = sbr.rel (%p125) target = $region16
        $region15: #{tpu_custom_call.1} parent=11 // pred_region
          %s129 = ssub.s32 1024, 1024
          %130 = vsyncadd [#allocation6], %s129
          %s131 = sshll.u32 [#allocation5], 4
          %s132 = int_to_ptr.vmem [resolvable:$true] %s131
          %137 = dma.hbm_to_vmem [thread:$0]  %s1, 1024, %s132, [#allocation6], 64, 64, 4
        $region16: #{tpu_custom_call.1} parent=11 // pred_fallthru
          _
        // Predicated region
        $region17: #{tpu_custom_call.1} parent=11 // pred_check
          %p138 = pneg %p84
        $region18: #{tpu_custom_call.1} parent=11 // pred_check_branch
          %140 = sbr.rel (%p138) target = $region20
        $region19: #{tpu_custom_call.1} parent=11 // pred_region
          _
        $region20: #{tpu_custom_call.1} parent=11 // pred_fallthru
          _
      $region12: #{tpu_custom_call.1} parent=5 // pred_fallthru
        _
      %p141 = scmp.lt.s32.totalorder %s16, 2
      // Predicated region
      $region21: #{tpu_custom_call.1} parent=5 // pred_check
        %p142 = pneg %p141
      $region22: #{tpu_custom_call.1} parent=5 // pred_check_branch
        %144 = sbr.rel (%p142) target = $region24
      $region23: #{tpu_custom_call.1} parent=5 // pred_region
        // Predicated region
        $region25: #{tpu_custom_call.1} parent=23 // pred_check
          %p145 = pneg %p36
        $region26: #{tpu_custom_call.1} parent=23 // pred_check_branch
          %147 = sbr.rel (%p145) target = $region28
        $region27: #{tpu_custom_call.1} parent=23 // pred_region
          %s148 = sand.u32 %s26, 1
          %s149 = scalar_lea.sflag [#allocation3], %s148
          %s150 = sand.u32 %s26, 1
          %s151 = smul.addr %s150, 128
          %s152 = scalar_lea.vmem [#allocation2], %s151
          %s153 = smul.u32 32, %s16
          %s155 = ssub.s32 2048, 2048
          %156 = vsyncadd %s149, %s155
          %s157 = smul.addr %s153, 64
          %s158 = scalar_lea.hbm %s0, %s157
          %s159 = sshll.u32 %s152, 4
          %s160 = int_to_ptr.vmem [resolvable:$true] %s159
          %165 = dma.hbm_to_vmem [thread:$0]  %s158, 2048, %s160, %s149, 64, 64, 4
        $region28: #{tpu_custom_call.1} parent=23 // pred_fallthru
          _
      $region24: #{tpu_custom_call.1} parent=5 // pred_fallthru
        _
      %p166 = scmp.le.s32.totalorder 1, %s16
      %p167 = scmp.lt.s32.totalorder %s16, 3
      %p168 = pnand %p166, %p167
      %p169 = pneg %p168
      // Predicated region
      $region29: #{tpu_custom_call.1} parent=5 // pred_check
        _
      $region30: #{tpu_custom_call.1} parent=5 // pred_check_branch
        %171 = sbr.rel (%p168) target = $region32
      $region31: #{tpu_custom_call.1} parent=5 // pred_region
        %s172 = ssub.s32 %s16, 1
        %s173 = sand.u32 %s29, 1
        %s174 = scalar_lea.sflag [#allocation3], %s173
        %s175 = sand.u32 %s29, 1
        %s176 = smul.addr %s175, 128
        %s177 = scalar_lea.vmem [#allocation2], %s176
        // Predicated region
        $region33: #{tpu_custom_call.1} parent=31 // pred_check
          %p178 = pneg %p42
        $region34: #{tpu_custom_call.1} parent=31 // pred_check_branch
          %180 = sbr.rel (%p178) target = $region36
        $region35: #{tpu_custom_call.1} parent=31 // pred_region
          %181 = dma.done %s174, 2048
        $region36: #{tpu_custom_call.1} parent=31 // pred_fallthru
          _
        // Predicated region
        $region37: #{tpu_custom_call.1} parent=31 // pred_check
          %p182 = pneg %p63
        $region38: #{tpu_custom_call.1} parent=31 // pred_check_branch
          %184 = sbr.rel (%p182) target = $region40
        $region39: #{tpu_custom_call.1} parent=31 // pred_region
          %185 = dma.done [#allocation6], 1024
        $region40: #{tpu_custom_call.1} parent=31 // pred_fallthru
          _
        %s186 = sand.u32 %s29, 1
        %s187 = scalar_lea.sflag [#allocation3], %s186
        %s188 = sand.u32 %s29, 1
        %s189 = smul.addr %s188, 128
        %s190 = scalar_lea.vmem [#allocation2], %s189
        %p191 = pneg %p42
        %p192 = pneg %p39
        %p193 = pneg %p63
        %p194 = pneg %p60
        %p195 = pneg %p84
        %p196 = pneg %p81
        %p197 = pneg %p110
        %p198 = pneg %p107
        %s199 = sand.u32 %s97, 1
        %s200 = scalar_lea.sflag [#allocation4], %s199
        %s201 = sand.u32 %s97, 1
        %s202 = smul.addr %s201, 256
        %s203 = scalar_lea.vmem [#allocation7], %s202
        %s204 = smul.u32 32, %s21
        %s205 = smul.u32 32, %s21
        %v207 = vld [vmem:[%s177] sm:$0xf]
        %v208 = vld [vmem:[%s177 + $0x4] sm:$0xf]
        %v209 = vld [vmem:[%s177 + $0x8] sm:$0xf]
        %v210 = vld [vmem:[%s177 + $0xc] sm:$0xf]
        %v211 = vld [vmem:[%s177 + $0x10] sm:$0xf]
        %v212 = vld [vmem:[%s177 + $0x14] sm:$0xf]
        %v213 = vld [vmem:[%s177 + $0x18] sm:$0xf]
        %v214 = vld [vmem:[%s177 + $0x1c] sm:$0xf]
        %v215 = vld [vmem:[%s177 + $0x20] sm:$0xf]
        %v216 = vld [vmem:[%s177 + $0x24] sm:$0xf]
        %v217 = vld [vmem:[%s177 + $0x28] sm:$0xf]
        %v218 = vld [vmem:[%s177 + $0x2c] sm:$0xf]
        %v219 = vld [vmem:[%s177 + $0x30] sm:$0xf]
        %v220 = vld [vmem:[%s177 + $0x34] sm:$0xf]
        %v221 = vld [vmem:[%s177 + $0x38] sm:$0xf]
        %v222 = vld [vmem:[%s177 + $0x3c] sm:$0xf]
        %v223 = vld [vmem:[%s177 + $0x40] sm:$0xf]
        %v224 = vld [vmem:[%s177 + $0x44] sm:$0xf]
        %v225 = vld [vmem:[%s177 + $0x48] sm:$0xf]
        %v226 = vld [vmem:[%s177 + $0x4c] sm:$0xf]
        %v227 = vld [vmem:[%s177 + $0x50] sm:$0xf]
        %v228 = vld [vmem:[%s177 + $0x54] sm:$0xf]
        %v229 = vld [vmem:[%s177 + $0x58] sm:$0xf]
        %v230 = vld [vmem:[%s177 + $0x5c] sm:$0xf]
        %v231 = vld [vmem:[%s177 + $0x60] sm:$0xf]
        %v232 = vld [vmem:[%s177 + $0x64] sm:$0xf]
        %v233 = vld [vmem:[%s177 + $0x68] sm:$0xf]
        %v234 = vld [vmem:[%s177 + $0x6c] sm:$0xf]
        %v235 = vld [vmem:[%s177 + $0x70] sm:$0xf]
        %v236 = vld [vmem:[%s177 + $0x74] sm:$0xf]
        %v237 = vld [vmem:[%s177 + $0x78] sm:$0xf]
        %v238 = vld [vmem:[%s177 + $0x7c] sm:$0xf]
        %v239 = vld [vmem:[#allocation5] sm:$0xf]
        %v240 = vld [vmem:[#allocation5 + $0x4] sm:$0xf]
        %v241 = vld [vmem:[#allocation5 + $0x8] sm:$0xf]
        %v242 = vld [vmem:[#allocation5 + $0xc] sm:$0xf]
        %v243 = vld [vmem:[#allocation5 + $0x10] sm:$0xf]
        %v244 = vld [vmem:[#allocation5 + $0x14] sm:$0xf]
        %v245 = vld [vmem:[#allocation5 + $0x18] sm:$0xf]
        %v246 = vld [vmem:[#allocation5 + $0x1c] sm:$0xf]
        %v247 = vld [vmem:[#allocation5 + $0x20] sm:$0xf]
        %v248 = vld [vmem:[#allocation5 + $0x24] sm:$0xf]
        %v249 = vld [vmem:[#allocation5 + $0x28] sm:$0xf]
        %v250 = vld [vmem:[#allocation5 + $0x2c] sm:$0xf]
        %v251 = vld [vmem:[#allocation5 + $0x30] sm:$0xf]
        %v252 = vld [vmem:[#allocation5 + $0x34] sm:$0xf]
        %v253 = vld [vmem:[#allocation5 + $0x38] sm:$0xf]
        %v254 = vld [vmem:[#allocation5 + $0x3c] sm:$0xf]
        %v287 = vunpack.c.l.b16 %v207
        %v288 = vunpack.c.l.b16 %v208
        %v289 = vunpack.c.l.b16 %v209
        %v290 = vunpack.c.l.b16 %v210
        %v291 = vunpack.c.l.b16 %v211
        %v292 = vunpack.c.l.b16 %v212
        %v293 = vunpack.c.l.b16 %v213
        %v294 = vunpack.c.l.b16 %v214
        %v295 = vunpack.c.l.b16 %v215
        %v296 = vunpack.c.l.b16 %v216
        %v297 = vunpack.c.l.b16 %v217
        %v298 = vunpack.c.l.b16 %v218
        %v299 = vunpack.c.l.b16 %v219
        %v300 = vunpack.c.l.b16 %v220
        %v301 = vunpack.c.l.b16 %v221
        %v302 = vunpack.c.l.b16 %v222
        %v303 = vunpack.c.l.b16 %v223
        %v304 = vunpack.c.l.b16 %v224
        %v305 = vunpack.c.l.b16 %v225
        %v306 = vunpack.c.l.b16 %v226
        %v307 = vunpack.c.l.b16 %v227
        %v308 = vunpack.c.l.b16 %v228
        %v309 = vunpack.c.l.b16 %v229
        %v310 = vunpack.c.l.b16 %v230
        %v311 = vunpack.c.l.b16 %v231
        %v312 = vunpack.c.l.b16 %v232
        %v313 = vunpack.c.l.b16 %v233
        %v314 = vunpack.c.l.b16 %v234
        %v315 = vunpack.c.l.b16 %v235
        %v316 = vunpack.c.l.b16 %v236
        %v317 = vunpack.c.l.b16 %v237
        %v318 = vunpack.c.l.b16 %v238
        %v319 = vpack.c.b16 %v288, %v287
        %v320 = vpack.c.b16 %v290, %v289
        %v321 = vpack.c.b16 %v292, %v291
        %v322 = vpack.c.b16 %v294, %v293
        %v323 = vpack.c.b16 %v296, %v295
        %v324 = vpack.c.b16 %v298, %v297
        %v325 = vpack.c.b16 %v300, %v299
        %v326 = vpack.c.b16 %v302, %v301
        %v327 = vpack.c.b16 %v304, %v303
        %v328 = vpack.c.b16 %v306, %v305
        %v329 = vpack.c.b16 %v308, %v307
        %v330 = vpack.c.b16 %v310, %v309
        %v331 = vpack.c.b16 %v312, %v311
        %v332 = vpack.c.b16 %v314, %v313
        %v333 = vpack.c.b16 %v316, %v315
        %v334 = vpack.c.b16 %v318, %v317
        %v367 = vunpack.c.l.b16 %v239
        %v368 = vunpack.c.l.b16 %v240
        %v369 = vunpack.c.l.b16 %v241
        %v370 = vunpack.c.l.b16 %v242
        %v371 = vunpack.c.l.b16 %v243
        %v372 = vunpack.c.l.b16 %v244
        %v373 = vunpack.c.l.b16 %v245
        %v374 = vunpack.c.l.b16 %v246
        %v375 = vunpack.c.l.b16 %v247
        %v376 = vunpack.c.l.b16 %v248
        %v377 = vunpack.c.l.b16 %v249
        %v378 = vunpack.c.l.b16 %v250
        %v379 = vunpack.c.l.b16 %v251
        %v380 = vunpack.c.l.b16 %v252
        %v381 = vunpack.c.l.b16 %v253
        %v382 = vunpack.c.l.b16 %v254
        %v383 = vpack.c.b16 %v368, %v367
        %v384 = vpack.c.b16 %v370, %v369
        %v385 = vpack.c.b16 %v372, %v371
        %v386 = vpack.c.b16 %v374, %v373
        %v387 = vpack.c.b16 %v376, %v375
        %v388 = vpack.c.b16 %v378, %v377
        %v389 = vpack.c.b16 %v380, %v379
        %v390 = vpack.c.b16 %v382, %v381
        %399 = vmatprep.subr.bf16.mxu0 0
        %400 = vmatpush1.bf16.msra.mxu0 %v383
        %401 = vmatprep.subr.bf16.mxu0 0
        %402 = vmatpush1.bf16.msra.mxu0 %v384
        %403 = vmatprep.subr.bf16.mxu0 0
        %404 = vmatpush1.bf16.msra.mxu0 %v385
        %405 = vmatprep.subr.bf16.mxu0 0
        %406 = vmatpush1.bf16.msra.mxu0 %v386
        %407 = vmatprep.subr.bf16.mxu0 0
        %408 = vmatpush1.bf16.msra.mxu0 %v387
        %409 = vmatprep.subr.bf16.mxu0 0
        %410 = vmatpush1.bf16.msra.mxu0 %v388
        %411 = vmatprep.subr.bf16.mxu0 0
        %412 = vmatpush1.bf16.msra.mxu0 %v389
        %413 = vmatprep.subr.bf16.mxu0 0
        %414 = vmatpush1.bf16.msra.mxu0 %v390
        %415 = vmatprep.subr.bf16.mxu0 0
        %416 = vmatpush1.bf16.msra.mxu0 0
        %417 = vmatprep.subr.bf16.mxu0 0
        %418 = vmatpush1.bf16.msra.mxu0 0
        %419 = vmatprep.subr.bf16.mxu0 0
        %420 = vmatpush1.bf16.msra.mxu0 0
        %421 = vmatprep.subr.bf16.mxu0 0
        %422 = vmatpush1.bf16.msra.mxu0 0
        %423 = vmatprep.subr.bf16.mxu0 0
        %424 = vmatpush1.bf16.msra.mxu0 0
        %425 = vmatprep.subr.bf16.mxu0 0
        %426 = vmatpush1.bf16.msra.mxu0 0
        %427 = vmatprep.subr.bf16.mxu0 0
        %428 = vmatpush1.bf16.msra.mxu0 0
        %429 = vmatprep.subr.bf16.mxu0 0
        %430 = vmatpush1.bf16.msra.mxu0 0
        %431 = vmatprep.mubr.bf16.mxu0 0
        %432 = vmatmul.mubr.bf16.gmra.mrb[0].mxu0 %v319
        %v433 = vpop.f32.mrb[0].mxu0
        %v434 = vadd.f32 0.0, %v433
        %v435 = vpop.f32.mrb[0].mxu0
        %v436 = vpop.f32.mrb[0].mxu0
        %v437 = vadd.f32 0.0, %v436
        %v438 = vpop.f32.mrb[0].mxu0
        %439 = vmatprep.mubr.bf16.mxu0 0
        %440 = vmatmul.mubr.bf16.gmra.mrb[0].mxu0 %v320
        %v441 = vpop.f32.mrb[0].mxu0
        %v442 = vadd.f32 0.0, %v441
        %v443 = vpop.f32.mrb[0].mxu0
        %v444 = vpop.f32.mrb[0].mxu0
        %v445 = vadd.f32 0.0, %v444
        %v446 = vpop.f32.mrb[0].mxu0
        %447 = vmatprep.mubr.bf16.mxu0 0
        %448 = vmatmul.mubr.bf16.gmra.mrb[0].mxu0 %v321
        %v449 = vpop.f32.mrb[0].mxu0
        %v450 = vadd.f32 0.0, %v449
        %v451 = vpop.f32.mrb[0].mxu0
        %v452 = vpop.f32.mrb[0].mxu0
        %v453 = vadd.f32 0.0, %v452
        %v454 = vpop.f32.mrb[0].mxu0
        %455 = vmatprep.mubr.bf16.mxu0 0
        %456 = vmatmul.mubr.bf16.gmra.mrb[0].mxu0 %v322
        %v457 = vpop.f32.mrb[0].mxu0
        %v458 = vadd.f32 0.0, %v457
        %v459 = vpop.f32.mrb[0].mxu0
        %v460 = vpop.f32.mrb[0].mxu0
        %v461 = vadd.f32 0.0, %v460
        %v462 = vpop.f32.mrb[0].mxu0
        %463 = vmatprep.mubr.bf16.mxu0 0
        %464 = vmatmul.mubr.bf16.gmra.mrb[0].mxu0 %v323
        %v465 = vpop.f32.mrb[0].mxu0
        %v466 = vadd.f32 0.0, %v465
        %v467 = vpop.f32.mrb[0].mxu0
        %v468 = vpop.f32.mrb[0].mxu0
        %v469 = vadd.f32 0.0, %v468
        %v470 = vpop.f32.mrb[0].mxu0
        %471 = vmatprep.mubr.bf16.mxu0 0
        %472 = vmatmul.mubr.bf16.gmra.mrb[0].mxu0 %v324
        %v473 = vpop.f32.mrb[0].mxu0
        %v474 = vadd.f32 0.0, %v473
        %v475 = vpop.f32.mrb[0].mxu0
        %v476 = vpop.f32.mrb[0].mxu0
        %v477 = vadd.f32 0.0, %v476
        %v478 = vpop.f32.mrb[0].mxu0
        %479 = vmatprep.mubr.bf16.mxu0 0
        %480 = vmatmul.mubr.bf16.gmra.mrb[0].mxu0 %v325
        %v481 = vpop.f32.mrb[0].mxu0
        %v482 = vadd.f32 0.0, %v481
        %v483 = vpop.f32.mrb[0].mxu0
        %v484 = vpop.f32.mrb[0].mxu0
        %v485 = vadd.f32 0.0, %v484
        %v486 = vpop.f32.mrb[0].mxu0
        %487 = vmatprep.mubr.bf16.mxu0 0
        %488 = vmatmul.mubr.bf16.gmra.mrb[0].mxu0 %v326
        %v489 = vpop.f32.mrb[0].mxu0
        %v490 = vadd.f32 0.0, %v489
        %v491 = vpop.f32.mrb[0].mxu0
        %v492 = vpop.f32.mrb[0].mxu0
        %v493 = vadd.f32 0.0, %v492
        %v494 = vpop.f32.mrb[0].mxu0
        %495 = vmatprep.mubr.bf16.mxu0 0
        %496 = vmatmul.mubr.bf16.gmra.mrb[0].mxu0 %v327
        %v497 = vpop.f32.mrb[0].mxu0
        %v498 = vadd.f32 0.0, %v497
        %v499 = vpop.f32.mrb[0].mxu0
        %v500 = vpop.f32.mrb[0].mxu0
        %v501 = vadd.f32 0.0, %v500
        %v502 = vpop.f32.mrb[0].mxu0
        %503 = vmatprep.mubr.bf16.mxu0 0
        %504 = vmatmul.mubr.bf16.gmra.mrb[0].mxu0 %v328
        %v505 = vpop.f32.mrb[0].mxu0
        %v506 = vadd.f32 0.0, %v505
        %v507 = vpop.f32.mrb[0].mxu0
        %v508 = vpop.f32.mrb[0].mxu0
        %v509 = vadd.f32 0.0, %v508
        %v510 = vpop.f32.mrb[0].mxu0
        %511 = vmatprep.mubr.bf16.mxu0 0
        %512 = vmatmul.mubr.bf16.gmra.mrb[0].mxu0 %v329
        %v513 = vpop.f32.mrb[0].mxu0
        %v514 = vadd.f32 0.0, %v513
        %v515 = vpop.f32.mrb[0].mxu0
        %v516 = vpop.f32.mrb[0].mxu0
        %v517 = vadd.f32 0.0, %v516
        %v518 = vpop.f32.mrb[0].mxu0
        %519 = vmatprep.mubr.bf16.mxu0 0
        %520 = vmatmul.mubr.bf16.gmra.mrb[0].mxu0 %v330
        %v521 = vpop.f32.mrb[0].mxu0
        %v522 = vadd.f32 0.0, %v521
        %v523 = vpop.f32.mrb[0].mxu0
        %v524 = vpop.f32.mrb[0].mxu0
        %v525 = vadd.f32 0.0, %v524
        %v526 = vpop.f32.mrb[0].mxu0
        %527 = vmatprep.mubr.bf16.mxu0 0
        %528 = vmatmul.mubr.bf16.gmra.mrb[0].mxu0 %v331
        %v529 = vpop.f32.mrb[0].mxu0
        %v530 = vadd.f32 0.0, %v529
        %v531 = vpop.f32.mrb[0].mxu0
        %v532 = vpop.f32.mrb[0].mxu0
        %v533 = vadd.f32 0.0, %v532
        %v534 = vpop.f32.mrb[0].mxu0
        %535 = vmatprep.mubr.bf16.mxu0 0
        %536 = vmatmul.mubr.bf16.gmra.mrb[0].mxu0 %v332
        %v537 = vpop.f32.mrb[0].mxu0
        %v538 = vadd.f32 0.0, %v537
        %v539 = vpop.f32.mrb[0].mxu0
        %v540 = vpop.f32.mrb[0].mxu0
        %v541 = vadd.f32 0.0, %v540
        %v542 = vpop.f32.mrb[0].mxu0
        %543 = vmatprep.mubr.bf16.mxu0 0
        %544 = vmatmul.mubr.bf16.gmra.mrb[0].mxu0 %v333
        %v545 = vpop.f32.mrb[0].mxu0
        %v546 = vadd.f32 0.0, %v545
        %v547 = vpop.f32.mrb[0].mxu0
        %v548 = vpop.f32.mrb[0].mxu0
        %v549 = vadd.f32 0.0, %v548
        %v550 = vpop.f32.mrb[0].mxu0
        %551 = vmatprep.mubr.bf16.mxu0 0
        %552 = vmatmul.mubr.bf16.gmra.mrb[0].mxu0 %v334
        %v553 = vpop.f32.mrb[0].mxu0
        %v554 = vadd.f32 0.0, %v553
        %v555 = vpop.f32.mrb[0].mxu0
        %v556 = vpop.f32.mrb[0].mxu0
        %v557 = vadd.f32 0.0, %v556
        %v558 = vpop.f32.mrb[0].mxu0
        %559 = vdwg.mxu0
        %v560 = vld [vmem:[%s2] sm:$0x1]
        %v561 = vlaneseq
        %v562 = vshrl.u32 %v561, 7
        %v563 = vsub.s32 0, %v562
        %v564 = vrot.slane %v560, %v563
        %v565 = vmul.f32 %v434, %v564
        %v566 = vmul.f32 %v437, %v564
        %v567 = vmul.f32 %v442, %v564
        %v568 = vmul.f32 %v445, %v564
        %v569 = vmul.f32 %v450, %v564
        %v570 = vmul.f32 %v453, %v564
        %v571 = vmul.f32 %v458, %v564
        %v572 = vmul.f32 %v461, %v564
        %v573 = vmul.f32 %v466, %v564
        %v574 = vmul.f32 %v469, %v564
        %v575 = vmul.f32 %v474, %v564
        %v576 = vmul.f32 %v477, %v564
        %v577 = vmul.f32 %v482, %v564
        %v578 = vmul.f32 %v485, %v564
        %v579 = vmul.f32 %v490, %v564
        %v580 = vmul.f32 %v493, %v564
        %v581 = vmul.f32 %v498, %v564
        %v582 = vmul.f32 %v501, %v564
        %v583 = vmul.f32 %v506, %v564
        %v584 = vmul.f32 %v509, %v564
        %v585 = vmul.f32 %v514, %v564
        %v586 = vmul.f32 %v517, %v564
        %v587 = vmul.f32 %v522, %v564
        %v588 = vmul.f32 %v525, %v564
        %v589 = vmul.f32 %v530, %v564
        %v590 = vmul.f32 %v533, %v564
        %v591 = vmul.f32 %v538, %v564
        %v592 = vmul.f32 %v541, %v564
        %v593 = vmul.f32 %v546, %v564
        %v594 = vmul.f32 %v549, %v564
        %v595 = vmul.f32 %v554, %v564
        %v596 = vmul.f32 %v557, %v564
        %v597 = vld [vmem:[%s2 + $0x1] sm:$0x1]
        %v598 = vlaneseq
        %v599 = vshrl.u32 %v598, 7
        %v600 = vsub.s32 0, %v599
        %v601 = vrot.slane %v597, %v600
        %v602 = vadd.f32 %v565, %v601
        %v603 = vadd.f32 %v566, %v601
        %v604 = vadd.f32 %v567, %v601
        %v605 = vadd.f32 %v568, %v601
        %v606 = vadd.f32 %v569, %v601
        %v607 = vadd.f32 %v570, %v601
        %v608 = vadd.f32 %v571, %v601
        %v609 = vadd.f32 %v572, %v601
        %v610 = vadd.f32 %v573, %v601
        %v611 = vadd.f32 %v574, %v601
        %v612 = vadd.f32 %v575, %v601
        %v613 = vadd.f32 %v576, %v601
        %v614 = vadd.f32 %v577, %v601
        %v615 = vadd.f32 %v578, %v601
        %v616 = vadd.f32 %v579, %v601
        %v617 = vadd.f32 %v580, %v601
        %v618 = vadd.f32 %v581, %v601
        %v619 = vadd.f32 %v582, %v601
        %v620 = vadd.f32 %v583, %v601
        %v621 = vadd.f32 %v584, %v601
        %v622 = vadd.f32 %v585, %v601
        %v623 = vadd.f32 %v586, %v601
        %v624 = vadd.f32 %v587, %v601
        %v625 = vadd.f32 %v588, %v601
        %v626 = vadd.f32 %v589, %v601
        %v627 = vadd.f32 %v590, %v601
        %v628 = vadd.f32 %v591, %v601
        %v629 = vadd.f32 %v592, %v601
        %v630 = vadd.f32 %v593, %v601
        %v631 = vadd.f32 %v594, %v601
        %v632 = vadd.f32 %v595, %v601
        %v633 = vadd.f32 %v596, %v601
        %v634 = vmax.f32 %v602, 0.0
        %v635 = vmax.f32 %v603, 0.0
        %v636 = vmax.f32 %v604, 0.0
        %v637 = vmax.f32 %v605, 0.0
        %v638 = vmax.f32 %v606, 0.0
        %v639 = vmax.f32 %v607, 0.0
        %v640 = vmax.f32 %v608, 0.0
        %v641 = vmax.f32 %v609, 0.0
        %v642 = vmax.f32 %v610, 0.0
        %v643 = vmax.f32 %v611, 0.0
        %v644 = vmax.f32 %v612, 0.0
        %v645 = vmax.f32 %v613, 0.0
        %v646 = vmax.f32 %v614, 0.0
        %v647 = vmax.f32 %v615, 0.0
        %v648 = vmax.f32 %v616, 0.0
        %v649 = vmax.f32 %v617, 0.0
        %v650 = vmax.f32 %v618, 0.0
        %v651 = vmax.f32 %v619, 0.0
        %v652 = vmax.f32 %v620, 0.0
        %v653 = vmax.f32 %v621, 0.0
        %v654 = vmax.f32 %v622, 0.0
        %v655 = vmax.f32 %v623, 0.0
        %v656 = vmax.f32 %v624, 0.0
        %v657 = vmax.f32 %v625, 0.0
        %v658 = vmax.f32 %v626, 0.0
        %v659 = vmax.f32 %v627, 0.0
        %v660 = vmax.f32 %v628, 0.0
        %v661 = vmax.f32 %v629, 0.0
        %v662 = vmax.f32 %v630, 0.0
        %v663 = vmax.f32 %v631, 0.0
        %v664 = vmax.f32 %v632, 0.0
        %v665 = vmax.f32 %v633, 0.0
        %666 = vst [vmem:[%s203] sm:$0xff] %v634
        %667 = vst [vmem:[%s203 + $0x8] sm:$0xff] %v635
        %668 = vst [vmem:[%s203 + $0x10] sm:$0xff] %v636
        %669 = vst [vmem:[%s203 + $0x18] sm:$0xff] %v637
        %670 = vst [vmem:[%s203 + $0x20] sm:$0xff] %v638
        %671 = vst [vmem:[%s203 + $0x28] sm:$0xff] %v639
        %672 = vst [vmem:[%s203 + $0x30] sm:$0xff] %v640
        %673 = vst [vmem:[%s203 + $0x38] sm:$0xff] %v641
        %674 = vst [vmem:[%s203 + $0x40] sm:$0xff] %v642
        %675 = vst [vmem:[%s203 + $0x48] sm:$0xff] %v643
        %676 = vst [vmem:[%s203 + $0x50] sm:$0xff] %v644
        %677 = vst [vmem:[%s203 + $0x58] sm:$0xff] %v645
        %678 = vst [vmem:[%s203 + $0x60] sm:$0xff] %v646
        %679 = vst [vmem:[%s203 + $0x68] sm:$0xff] %v647
        %680 = vst [vmem:[%s203 + $0x70] sm:$0xff] %v648
        %681 = vst [vmem:[%s203 + $0x78] sm:$0xff] %v649
        %682 = vst [vmem:[%s203 + $0x80] sm:$0xff] %v650
        %683 = vst [vmem:[%s203 + $0x88] sm:$0xff] %v651
        %684 = vst [vmem:[%s203 + $0x90] sm:$0xff] %v652
        %685 = vst [vmem:[%s203 + $0x98] sm:$0xff] %v653
        %686 = vst [vmem:[%s203 + $0xa0] sm:$0xff] %v654
        %687 = vst [vmem:[%s203 + $0xa8] sm:$0xff] %v655
        %688 = vst [vmem:[%s203 + $0xb0] sm:$0xff] %v656
        %689 = vst [vmem:[%s203 + $0xb8] sm:$0xff] %v657
        %690 = vst [vmem:[%s203 + $0xc0] sm:$0xff] %v658
        %691 = vst [vmem:[%s203 + $0xc8] sm:$0xff] %v659
        %692 = vst [vmem:[%s203 + $0xd0] sm:$0xff] %v660
        %693 = vst [vmem:[%s203 + $0xd8] sm:$0xff] %v661
        %694 = vst [vmem:[%s203 + $0xe0] sm:$0xff] %v662
        %695 = vst [vmem:[%s203 + $0xe8] sm:$0xff] %v663
        %696 = vst [vmem:[%s203 + $0xf0] sm:$0xff] %v664
        %697 = vst [vmem:[%s203 + $0xf8] sm:$0xff] %v665
        %s698 = sand.u32 %s97, 1
        %s699 = scalar_lea.sflag [#allocation4], %s698
        %s700 = sand.u32 %s97, 1
        %s701 = smul.addr %s700, 256
        %s702 = scalar_lea.vmem [#allocation7], %s701
        // Predicated region
        $region41: #{tpu_custom_call.1} parent=31 // pred_check
          %p703 = pneg %p107
        $region42: #{tpu_custom_call.1} parent=31 // pred_check_branch
          %705 = sbr.rel (%p703) target = $region44
        $region43: #{tpu_custom_call.1} parent=31 // pred_region
          %s706 = smul.u32 32, %s21
          %s708 = ssub.s32 4096, 4096
          %709 = vsyncadd %s699, %s708
          %s710 = smul.addr %s706, 128
          %s711 = scalar_lea.hbm %s3, %s710
          %s712 = sshll.u32 %s702, 4
          %s713 = int_to_ptr.vmem [resolvable:$true] %s712
          %718 = dma.vmem_to_hbm [thread:$0]  %s713, 4096, %s711, %s699, 128, 128, 8
        $region44: #{tpu_custom_call.1} parent=31 // pred_fallthru
          _
      $region32: #{tpu_custom_call.1} parent=5 // pred_fallthru
        _
      %p719 = scmp.le.s32.totalorder 2, %s16
      // Predicated region
      $region45: #{tpu_custom_call.1} parent=5 // pred_check
        %p720 = pneg %p719
      $region46: #{tpu_custom_call.1} parent=5 // pred_check_branch
        %722 = sbr.rel (%p720) target = $region48
      $region47: #{tpu_custom_call.1} parent=5 // pred_region
        %s723 = ssub.s32 %s16, 2
        // Predicated region
        $region49: #{tpu_custom_call.1} parent=47 // pred_check
          %p724 = pneg %p113
        $region50: #{tpu_custom_call.1} parent=47 // pred_check_branch
          %726 = sbr.rel (%p724) target = $region52
        $region51: #{tpu_custom_call.1} parent=47 // pred_region
          %s727 = sand.u32 %s98, 1
          %s728 = scalar_lea.sflag [#allocation4], %s727
          %s729 = sand.u32 %s98, 1
          %s730 = smul.addr %s729, 256
          %s731 = scalar_lea.vmem [#allocation7], %s730
          %732 = dma.done %s728, 4096
        $region52: #{tpu_custom_call.1} parent=47 // pred_fallthru
          _
      $region48: #{tpu_custom_call.1} parent=5 // pred_fallthru
        _
    $region6: #{tpu_custom_call.1} parent=1 // loop_footer
      %s20 = sadd.s32 1, %s16
    $region7: #{tpu_custom_call.1} parent=1 // loop_footer_branch
      %15 = sbr.rel target = $region3
    $region8: #{tpu_custom_call.1} parent=1 // loop_exit
      _
    %733 = vsyncpa [#allocation3], 1
    %s734 = scalar_lea.sflag [#allocation3], 1
    %735 = vsyncpa %s734, 1
    %736 = vsyncpa [#allocation6], 1
    %737 = vsyncpa [#allocation4], 1
    %s738 = scalar_lea.sflag [#allocation4], 1
    %739 = vsyncpa %s738, 1

</llo_original>
